<compile_context>
chip_gen: v7x
topology: tpu7x:2x2x1
jax: 0.10.0
libtpu: 0.0.40
codegen_flags: <defaults>
</compile_context>

<pallas_src>
import functools

import numpy as np
import jax
import jax.numpy as jnp
from jax import lax
from jax.experimental import pallas as pl
from jax.experimental.pallas import tpu as pltpu

NUM_BITS = 4
K_SIGMA = 3.0
NORM_BUDGET = 0.5


# ----------------------------------------------------------------------------
# init-time glue: weight quantize->dequantize and SVD-based LoRA init
# (these run once at module construction in PyTorch, so plain JAX is fine)
# ----------------------------------------------------------------------------
def qdq_weight(w, num_bits, k):
    levels = float(2 ** num_bits - 1)
    if k is not None:
        mu = jnp.mean(w)
        std = jnp.std(w, ddof=1)
        alpha = mu - k * std
        beta = mu + k * std
        wc = jnp.clip(w, alpha, beta)
    else:
        alpha = jnp.min(w)
        beta = jnp.max(w)
        wc = w
    scale = jnp.maximum((beta - alpha) / levels, 1e-8)
    q = jnp.clip(jnp.round((wc - alpha) / scale), 0.0, levels)
    return q * scale + alpha


def get_residual_lora(dw, rank):
    """dw: (C_out, C_in, KH, KW) residual; b_mat @ a_mat.T ~= dw.reshape(C_out, K)."""
    c_out = dw.shape[0]
    k = dw.shape[1] * dw.shape[2] * dw.shape[3]
    dw2 = dw.reshape(c_out, k)
    u, s, vh = jnp.linalg.svd(dw2, full_matrices=False)
    rank = min(rank, s.shape[0])
    s_sqrt = jnp.sqrt(s[:rank])
    a_mat = vh[:rank, :].T * s_sqrt[None, :]          # (K, rank)
    b_mat = u[:, :rank] * s_sqrt[None, :]             # (C_out, rank)
    return rank, a_mat, b_mat


# ----------------------------------------------------------------------------
# one-time (per-weights) preprocessing, hoisted out of the forward path
# ----------------------------------------------------------------------------
def prepare_cora_weights(w_qdq, bias, a_w, b_w):
    """Fold LoRA into the main conv weight and repack per tap.

    Returns:
      w_taps:   (kh*kw, Cout, Cin_pad) f32,  w_taps[t, o, c] = W_eff[o, c, i, j], t = i*kw + j
      bias_col: (Cout, 1) f32
    """
    c_out, c_in, kh, kw = w_qdq.shape
    # composite LoRA conv weight:  (B 1x1) o (A kxk)  ==  einsum over rank (exact)
    lora_w = jnp.einsum("or,rcij->ocij", b_w[:, :, 0, 0], a_w)
    w_eff = (w_qdq + lora_w).astype(jnp.float32)
    w_taps = jnp.transpose(w_eff, (2, 3, 0, 1)).reshape(kh * kw, c_out, c_in)
    c_in_pad = ((c_in + 7) // 8) * 8                  # align contraction dim to sublanes
    w_taps = jnp.pad(w_taps, ((0, 0), (0, 0), (0, c_in_pad - c_in)))
    bias_col = bias.reshape(c_out, 1).astype(jnp.float32)
    return w_taps, bias_col


def build_pad_masks(h_dim, w_dim, kh, kw):
    """(kh*kw, H*W) 0/1 masks: mask[t, p] == 1 iff output position p reads an
    in-image input for tap t (reproduces conv zero-padding with qdq-before-pad)."""
    ph, pw = kh // 2, kw // 2
    p = np.arange(h_dim * w_dim)
    hh, ww = p // w_dim, p % w_dim
    rows = []
    for t in range(kh * kw):
        dh, dw = t // kw - ph, t % kw - pw
        valid = (hh + dh >= 0) & (hh + dh < h_dim) & (ww + dw >= 0) & (ww + dw < w_dim)
        rows.append(valid.astype(np.float32))
    return jnp.asarray(np.stack(rows, axis=0))


# ----------------------------------------------------------------------------
# hardware-aware grid choice
# ----------------------------------------------------------------------------
def _num_tensorcores():
    """Best-effort TensorCore count per chip: 1 on v5e/v6e, 2 on v7x."""
    try:
        info = pltpu.get_tpu_info()
        for attr in ("num_cores", "core_count", "num_tensorcores",
                     "tensorcore_count", "num_cores_per_chip"):
            v = getattr(info, attr, None)
            if isinstance(v, (int, np.integer)) and int(v) > 0:
                return int(v)
    except Exception:
        pass
    try:
        kind = jax.devices()[0].device_kind.lower()
        if "7" in kind:
            return 2
    except Exception:
        pass
    return 1


def _choose_num_tiles(n_images, hw, cin_p, cout, num_cores):
    """One 'parallel' grid step per TensorCore, growing the grid only if a
    per-step block would blow the scoped-VMEM budget (16 MiB default on v5e,
    32 MiB on v6e/v7x; v7x physical VMEM is 64 MiB)."""
    budget = 8 << 20                                  # ample headroom under 16 MiB
    divisors = [d for d in range(1, n_images + 1) if n_images % d == 0]
    start = min([d for d in divisors if d >= min(num_cores, n_images)] or [n_images])
    for d in divisors:
        if d < start:
            continue
        step_bytes = 8 * (n_images // d) * hw * (cin_p + cout)  # 2x-buffered f32 x + out
        if step_bytes <= budget:
            return d
    return n_images


@functools.lru_cache(maxsize=None)
def _pltpu_roll_matches_jnp_roll():
    """One-time probe pinning pltpu.roll's rotation direction to jnp.roll."""
    def k(x_ref, o_ref):
        o_ref[...] = pltpu.roll(x_ref[...], 1, 1)
    x = jnp.tile(jnp.arange(128, dtype=jnp.float32)[None, :], (8, 1))
    y = pl.pallas_call(k, out_shape=jax.ShapeDtypeStruct((8, 128), jnp.float32))(x)
    return bool(jnp.allclose(y, jnp.roll(x, 1, axis=1)))


# ----------------------------------------------------------------------------
# Pallas kernel: fused input-qdq + 3x3 conv (LoRA folded) + bias
#   out[n, :, p] = bias + sum_t W_tap_t @ (mask_t * shift_t(qdq(x[n])))
# ----------------------------------------------------------------------------
def _cora_conv_kernel(q_ref, x_ref, w_ref, m_ref, b_ref, o_ref, *,
                      n_block, hw, cout, shifts, levels):
    alpha = q_ref[0]
    scale = q_ref[1]
    inv_scale = q_ref[2]

    ntaps = len(shifts)
    # resident per-tap weights / zero-padding masks (loaded once per grid step)
    w_taps = [w_ref[t] for t in range(ntaps)]                 # (Cout, Cin_pad) each
    mask_rows = [m_ref[t:t + 1, :] for t in range(ntaps)]     # (1, hw) each, in {0, 1}
    bias_b = jnp.broadcast_to(b_ref[...], (cout, hw)).astype(jnp.float32)  # hoisted

    for nb in range(n_block):                                 # static unroll over images
        x = x_ref[nb]                                         # (Cin_pad, hw) raw input
        # fused input quantize -> dequantize (VPU work, hidden under the tap matmuls)
        q = jnp.clip(jnp.round((x - alpha) * inv_scale), 0.0, levels)
        xq = q * scale + alpha

        acc = bias_b                                          # bias folded into acc init
        for t in range(ntaps):
            r = shifts[t] % hw
            # xs[:, p] = xq[:, p + dh*W + dw]  (lane rotation; wrapped lanes are masked)
            xs = xq if r == 0 else pltpu.roll(xq, r, 1)
            xs = xs * mask_rows[t]                            # re-zero conv zero-padding taps
            acc = acc + jnp.dot(w_taps[t], xs, preferred_element_type=jnp.float32)
        o_ref[nb] = acc.astype(o_ref.dtype)


# ----------------------------------------------------------------------------
# CoRa forward (hooks enabled) built on the single fused Pallas kernel
# ----------------------------------------------------------------------------
@functools.partial(jax.jit, static_argnames=("num_bits", "kh", "kw",
                                              "num_tiles", "roll_like_jnp"))
def cora_forward(x, w_taps, bias_col, masks, *, num_bits, kh, kw,
                 num_tiles, roll_like_jnp):
    n_img, c_in, h_dim, w_dim = x.shape
    ntaps, c_out, c_in_pad = w_taps.shape
    hw = h_dim * w_dim
    levels = float(2 ** num_bits - 1)

    # input-quant params: tiny scalar reduce; the qdq itself is fused in-kernel
    alpha = jnp.min(x)
    beta = jnp.max(x)
    scale = jnp.maximum((beta - alpha) / levels, 1e-8)
    qparams = jnp.stack([alpha, scale, 1.0 / scale]).astype(jnp.float32)

    # NCHW -> (N, Cin, H*W) is a free (contiguous) reshape; pad channels to a
    # sublane multiple so every tap matmul has an aligned contraction dim.
    x_r = x.reshape(n_img, c_in, hw).astype(jnp.float32)
    if c_in_pad > c_in:
        x_r = jnp.pad(x_r, ((0, 0), (0, c_in_pad - c_in), (0, 0)))

    nt = num_tiles if (num_tiles >= 1 and n_img % num_tiles == 0) else 1
    n_block = n_img // nt

    # per-tap lane shift: output flat index p reads input flat index p + dh*W + dw
    ph, pw = kh // 2, kw // 2
    sign = -1 if roll_like_jnp else 1
    shifts = tuple(sign * ((t // kw - ph) * w_dim + (t % kw - pw)) for t in range(ntaps))

    kernel = functools.partial(_cora_conv_kernel, n_block=n_block, hw=hw,
                               cout=c_out, shifts=shifts, levels=levels)
    out = pl.pallas_call(
        kernel,
        out_shape=jax.ShapeDtypeStruct((n_img, c_out, hw), jnp.float32),
        grid=(nt,),
        in_specs=[
            pl.BlockSpec(memory_space=pltpu.MemorySpace.SMEM),            # alpha/scale/inv
            pl.BlockSpec((n_block, c_in_pad, hw), lambda i: (i, 0, 0)),   # x block per core
            pl.BlockSpec((ntaps, c_out, c_in_pad), lambda i: (0, 0, 0)),  # per-tap weights
            pl.BlockSpec((ntaps, hw), lambda i: (0, 0)),                  # padding masks
            pl.BlockSpec((c_out, 1), lambda i: (0, 0)),                   # bias column
        ],
        out_specs=pl.BlockSpec((n_block, c_out, hw), lambda i: (i, 0, 0)),
        compiler_params=pltpu.CompilerParams(
            dimension_semantics=("parallel",)),               # 1 step/core (2 on v7x)
    )(qparams, x_r, w_taps, masks, bias_col)

    return out.reshape(n_img, c_out, h_dim, w_dim)            # already NCHW, no transpose


# ----------------------------------------------------------------------------
# pure-JAX reference (lax convs, LoRA unfolded) for correctness check
# ----------------------------------------------------------------------------
def reference_forward(x, w_qdq, bias, a_w, b_w, *, num_bits):
    levels = float(2 ** num_bits - 1)
    alpha = jnp.min(x)
    beta = jnp.max(x)
    scale = jnp.maximum((beta - alpha) / levels, 1e-8)
    inv_scale = 1.0 / scale
    xq = jnp.clip(jnp.round((x - alpha) * inv_scale), 0.0, levels) * scale + alpha

    dn = ("NCHW", "OIHW", "NCHW")
    hi = lax.Precision.HIGHEST
    y = lax.conv_general_dilated(xq, w_qdq, (1, 1), [(1, 1), (1, 1)],
                                 dimension_numbers=dn, precision=hi)
    y = y + bias[None, :, None, None]
    z1 = lax.conv_general_dilated(xq, a_w, (1, 1), [(1, 1), (1, 1)],
                                  dimension_numbers=dn, precision=hi)
    z = lax.conv_general_dilated(z1, b_w, (1, 1), [(0, 0), (0, 0)],
                                 dimension_numbers=dn, precision=hi)
    return y + z


if __name__ == "__main__":
    key = jax.random.PRNGKey(0)
    kx, kwght, kb = jax.random.split(key, 3)

    N, Cin, H, W = 2, 4, 16, 16
    Cout, kh, kwid = 8, 3, 3

    x = jax.random.normal(kx, (N, Cin, H, W), dtype=jnp.float32)
    w = jax.random.normal(kwght, (Cout, Cin, kh, kwid), dtype=jnp.float32) * 0.1
    bias = jax.random.normal(kb, (Cout,), dtype=jnp.float32) * 0.1

    # CoRaModel.__init__: quantize main conv weights, keep residual
    w_qdq = qdq_weight(w, NUM_BITS, K_SIGMA)
    dw = w - w_qdq

    # get_lora_rank_hard + init_lora (SVD of the residual)
    rank = max(1, min(int(Cin * NORM_BUDGET), int(Cout * NORM_BUDGET)))
    rank, a_mat, b_mat = get_residual_lora(dw, rank)
    a_w = a_mat.T.reshape(rank, Cin, kh, kwid)      # LoRA A conv weight (R, Cin, kh, kw)
    b_w = b_mat.reshape(Cout, rank, 1, 1)           # LoRA B 1x1 conv weight

    # one-time preprocessing (weights are static across forward calls)
    w_taps, bias_col = prepare_cora_weights(w_qdq, bias, a_w, b_w)
    masks = build_pad_masks(H, W, kh, kwid)

    num_cores = _num_tensorcores()
    num_tiles = _choose_num_tiles(N, H * W, w_taps.shape[2], Cout, num_cores)
    roll_like_jnp = _pltpu_roll_matches_jnp_roll()

    out = cora_forward(x, w_taps, bias_col, masks,
                       num_bits=NUM_BITS, kh=kh, kw=kwid,
                       num_tiles=num_tiles, roll_like_jnp=roll_like_jnp)
    out = jax.block_until_ready(out)

    ref = reference_forward(x, w_qdq, bias, a_w, b_w, num_bits=NUM_BITS)
    ref = jax.block_until_ready(ref)

    assert out.shape == (N, Cout, H, W)
    err = float(jnp.max(jnp.abs(out - ref)))
    assert jnp.allclose(out, ref, atol=1e-4, rtol=1e-4), err

    print("KERNEL_OK")
</pallas_src>

<mosaic_0001>
module attributes {stable_mosaic.version = 11 : i64} {
  func.func @k(%arg0: memref<8x128xf32, #tpu.memory_space<vmem>>, %arg1: memref<8x128xf32, #tpu.memory_space<vmem>>) attributes {dimension_semantics = [], scalar_prefetch = 0 : i64, scratch_operands = 0 : i64, tpu.core_type = #tpu.core_type<tc>} {
    %c0 = arith.constant 0 : index
    %c0_0 = arith.constant 0 : index
    %0 = vector.load %arg0[%c0, %c0_0] : memref<8x128xf32, #tpu.memory_space<vmem>>, vector<8x128xf32>
    %c1_i32 = arith.constant 1 : i32
    %1 = tpu.dynamic_rotate %0 by %c1_i32 dim 1 : vector<8x128xf32>, i32 -> vector<8x128xf32>
    %c0_1 = arith.constant 0 : index
    %c0_2 = arith.constant 0 : index
    %2 = vector.load %arg1[%c0_1, %c0_2] : memref<8x128xf32, #tpu.memory_space<vmem>>, vector<8x128xf32>
    tpu.vector_store %arg1[%c0_1, %c0_2], %1 {strides = array<i32>} : memref<8x128xf32, #tpu.memory_space<vmem>>, vector<8x128xf32>,
    return
  }
}

</mosaic_0001>

<llo_original>
// kernel: tpu_custom_call.1
$region0: #{tpu_custom_call.1}
  #allocation0 [shape = 'u32[]', space=smem, size = 0x4, offset = 0x4, fixed_abs, tag = 'smem constant byte address 0x4 - core index']
  #allocation1 [shape = 'u32[144,128]{1,0:T(1,128)}', space=vmem, size = 0x12000, scoped, tag = 'internal scratch']
  %s0 = inlined_call_operand.hbm [shape: f32[8,128], index: 0, kind: input, shape index: {}]
  %s1 = inlined_call_operand.hbm [shape: f32[8,128], index: 1, kind: output, shape index: {}]
  %s2 = sld [smem:[#allocation0]]
  $region18: #{tpu_custom_call.1} parent=0
    _
  %s4 = ssub.s32 1, %s2
  %s5 = scalar_select 0, %s4, %s2
  $region1: #{tpu_custom_call.1} parent=0
    #allocation2 [shape = 'u8[4096]{0}', space=vmem, size = 0x1000, scoped, tag = 'input window, operand 0, single buffered']
    #allocation3 [shape = 's32[1]{0}', space=sflag, size = 0x4, scoped, tag = 'scoped memory for tpu_custom_call.1']
    #allocation4 [shape = 's32[1]{0}', space=sflag, size = 0x4, scoped, tag = 'scoped memory for tpu_custom_call.1']
    #allocation5 [shape = 'u8[4096]{0}', space=vmem, size = 0x1000, scoped, tag = 'output window, operand 0, single buffered']
    %6 = vsyncpa [#allocation3], 0
    %7 = vsyncpa [#allocation4], 0
    // Predicated region
    $region2: #{tpu_custom_call.1} parent=1 // pred_check
      _
    $region3: #{tpu_custom_call.1} parent=1 // pred_check_branch
      %9 = sbr.rel (0) target = $region5
    $region4: #{tpu_custom_call.1} parent=1 // pred_region
      %s11 = ssub.s32 128, 128
      %12 = vsyncadd [#allocation3], %s11
      %s14 = sshll.u32 [#allocation2], 4
      %s15 = int_to_ptr.vmem [resolvable:$true] %s14
      %17 = dma.hbm_to_vmem [thread:$0]  %s0, 128, %s15, [#allocation3]
    $region5: #{tpu_custom_call.1} parent=1 // pred_fallthru
      _
    // Predicated region
    $region6: #{tpu_custom_call.1} parent=1 // pred_check
      _
    $region7: #{tpu_custom_call.1} parent=1 // pred_check_branch
      %19 = sbr.rel (0) target = $region9
    $region8: #{tpu_custom_call.1} parent=1 // pred_region
      %20 = dma.done [#allocation3], 128
    $region9: #{tpu_custom_call.1} parent=1 // pred_fallthru
      _
    %v21 = vld [vmem:[#allocation2] sm:$0xff]
    %22 = vrot.lane.b32.xlu0 %v21, 1
    %v23 = vpop.permute.xlu0 %22
    %24 = vst [vmem:[#allocation5] sm:$0xff] %v23
    // Predicated region
    $region10: #{tpu_custom_call.1} parent=1 // pred_check
      _
    $region11: #{tpu_custom_call.1} parent=1 // pred_check_branch
      %26 = sbr.rel (0) target = $region13
    $region12: #{tpu_custom_call.1} parent=1 // pred_region
      %s28 = ssub.s32 128, 128
      %29 = vsyncadd [#allocation4], %s28
      %s31 = sshll.u32 [#allocation5], 4
      %s32 = int_to_ptr.vmem [resolvable:$true] %s31
      %34 = dma.vmem_to_hbm [thread:$0]  %s32, 128, %s1, [#allocation4]
    $region13: #{tpu_custom_call.1} parent=1 // pred_fallthru
      _
    // Predicated region
    $region14: #{tpu_custom_call.1} parent=1 // pred_check
      _
    $region15: #{tpu_custom_call.1} parent=1 // pred_check_branch
      %36 = sbr.rel (0) target = $region17
    $region16: #{tpu_custom_call.1} parent=1 // pred_region
      %37 = dma.done [#allocation4], 128
    $region17: #{tpu_custom_call.1} parent=1 // pred_fallthru
      _
    %38 = vsyncpa [#allocation3], 1
    %39 = vsyncpa [#allocation4], 1

</llo_original>
